<compile_context>
chip_gen: v5e
topology: v5e:2x2
jax: 0.10.0
libtpu: 0.0.40
codegen_flags: <defaults>
</compile_context>

<pallas_src>
import functools

import jax
import jax.numpy as jnp
from jax.experimental import pallas as pl
from jax.experimental.pallas import tpu as pltpu


_EPS = 1e-5          # nn.BatchNorm1d default eps
_SLOPE = 0.01        # nn.LeakyReLU default negative_slope
_LANE = 128
_SUB_BF16 = 16       # bf16 sublane tile


def _round_up(n, m):
    return ((n + m - 1) // m) * m


def _leaky_relu(x):
    # slope < 1 -> max(x, slope*x) == leaky_relu(x); one mul + one max.
    return jnp.maximum(x, _SLOPE * x)


def _bn_train(h, gamma, beta):
    """Training-mode BatchNorm1d (batch stats, biased var), two-pass, folded."""
    inv_n = 1.0 / h.shape[0]
    mean = jnp.sum(h, axis=0, keepdims=True) * inv_n
    d = h - mean
    var = jnp.sum(d * d, axis=0, keepdims=True) * inv_n
    scale = gamma * jax.lax.rsqrt(var + _EPS)      # rsqrt -> EUP slot
    return d * scale + beta


def _layer_dims(n_features, z_dim):
    enc = [(n_features, 200), (200, 100), (100, 50), (50, z_dim)]
    dec = [(z_dim, 50), (50, 100), (100, 200), (200, n_features)]
    return enc, dec


def _padded_dims(n_features, z_dim):
    nf = n_features
    R = max(_LANE, _round_up(nf, _SUB_BF16))   # wb slab sublane extent
    C = max(_LANE, _round_up(nf, _LANE))       # wc slab lane extent (last fout)
    enc_p = (256, 128, 128, 128)               # padded widths of 200,100,50,z
    dec_p = (128, 128, 256, C)                 # padded widths of 50,100,200,nf
    vec_w = max(max(enc_p), max(dec_p))
    return R, C, enc_p, dec_p, vec_w


# ----------------------------------------------------------------------------
# kernel
# ----------------------------------------------------------------------------

def _make_kernel(nf, enc_p, dec_p):
    """Kernel closed over static layer widths (all shapes compile-time)."""

    def kernel(x_ref, wa_ref, wb_ref, wc_ref, vec_ref, out_ref):
        def dot(h, w):
            return jnp.dot(h.astype(jnp.bfloat16), w,
                           preferred_element_type=jnp.float32)

        def vec(row, width):
            # static row / static lane slice of the packed vector slab
            return vec_ref[row:row + 1, :width]

        h = x_ref[...].astype(jnp.float32)

        # ---------------- encoder: Linear -> LeakyReLU -> BatchNorm ----------
        # layer 1: K = n_features (unpadded x), weight rows sliced from wb[0]
        h = _leaky_relu(dot(h, wb_ref[0, :nf, :]) + vec(0, enc_p[0]))
        h = _bn_train(h, vec(4, enc_p[0]), vec(8, enc_p[0]))
        # layer 2: wc[0], cols :128
        h = _leaky_relu(dot(h, wc_ref[0, :, :_LANE]) + vec(1, enc_p[1]))
        h = _bn_train(h, vec(5, enc_p[1]), vec(9, enc_p[1]))
        # layers 3, 4: wa[0], wa[1]
        for i in (2, 3):
            h = _leaky_relu(dot(h, wa_ref[i - 2]) + vec(i, enc_p[i]))
            h = _bn_train(h, vec(4 + i, enc_p[i]), vec(8 + i, enc_p[i]))

        # ---------------- decoder: Linear -> LeakyReLU (last: ReLU) ----------
        for j in (0, 1):                                   # wa[2], wa[3]
            h = _leaky_relu(dot(h, wa_ref[2 + j]) + vec(12 + j, dec_p[j]))
        h = _leaky_relu(dot(h, wb_ref[1, :_LANE, :]) + vec(14, dec_p[2]))
        h = jnp.maximum(dot(h, wc_ref[1]) + vec(15, dec_p[3]), 0.0)

        # trim padded lanes in-kernel (masked store) -> direct (b, nf) output
        out_ref[...] = h[:, :nf].astype(out_ref.dtype)

    return kernel


# ----------------------------------------------------------------------------
# parameters
# ----------------------------------------------------------------------------

def init_params(key, n_features, z_dim, dtype=jnp.float32):
    """Unpadded parameters, shapes matching the PyTorch module."""
    enc_dims, dec_dims = _layer_dims(n_features, z_dim)
    params = []
    keys = jax.random.split(key, (len(enc_dims) + len(dec_dims)) * 2)
    ki = 0

    for (fin, fout) in enc_dims:            # Linear + BatchNorm per block
        bound = 1.0 / jnp.sqrt(jnp.asarray(fin, dtype))
        w = jax.random.uniform(keys[ki], (fin, fout), dtype, -bound, bound); ki += 1
        b = jax.random.uniform(keys[ki], (1, fout), dtype, -bound, bound); ki += 1
        gamma = jnp.ones((1, fout), dtype)   # BN weight init
        beta = jnp.zeros((1, fout), dtype)   # BN bias init
        params += [w, b, gamma, beta]

    for (fin, fout) in dec_dims:             # Linear per block
        bound = 1.0 / jnp.sqrt(jnp.asarray(fin, dtype))
        w = jax.random.uniform(keys[ki], (fin, fout), dtype, -bound, bound); ki += 1
        b = jax.random.uniform(keys[ki], (1, fout), dtype, -bound, bound); ki += 1
        params += [w, b]

    return params


def pack_params(params, n_features, z_dim):
    """Pack 8 weights into 3 bf16 slabs and 16 small vectors into one f32 slab.

    Zero padding keeps padded lanes exactly 0 through every layer (zero weight
    rows/cols, zero gamma/beta/bias lanes) -- this invariant is load-bearing.
    """
    assert z_dim <= _LANE, "z_dim > 128 requires a different packing"
    nf = n_features
    R, C, enc_p, dec_p, vec_w = _padded_dims(nf, z_dim)

    enc = [tuple(params[4 * i: 4 * i + 4]) for i in range(4)]      # (w,b,g,bt)
    dec = [tuple(params[16 + 2 * j: 16 + 2 * j + 2]) for j in range(4)]  # (w,b)

    def put(buf, idx, w):
        return buf.at[idx, :w.shape[0], :w.shape[1]].set(w.astype(jnp.float32))

    wa = jnp.zeros((4, _LANE, _LANE), jnp.float32)
    wa = put(wa, 0, enc[2][0])   # (100, 50)
    wa = put(wa, 1, enc[3][0])   # (50, z)
    wa = put(wa, 2, dec[0][0])   # (z, 50)
    wa = put(wa, 3, dec[1][0])   # (50, 100)

    wb = jnp.zeros((2, R, 256), jnp.float32)
    wb = put(wb, 0, enc[0][0])   # (nf, 200)
    wb = put(wb, 1, dec[2][0])   # (100, 200)

    wc = jnp.zeros((2, 256, C), jnp.float32)
    wc = put(wc, 0, enc[1][0])   # (200, 100)
    wc = put(wc, 1, dec[3][0])   # (200, nf)

    def padv(v):
        vp = jnp.zeros((1, vec_w), jnp.float32)
        return vp.at[:, :v.shape[1]].set(v.astype(jnp.float32))

    rows = ([padv(enc[i][1]) for i in range(4)]      # enc biases   rows 0-3
            + [padv(enc[i][2]) for i in range(4)]    # gammas       rows 4-7
            + [padv(enc[i][3]) for i in range(4)]    # betas        rows 8-11
            + [padv(dec[j][1]) for j in range(4)])   # dec biases   rows 12-15
    vec_slab = jnp.concatenate(rows, axis=0)         # (16, vec_w) f32

    weights = (wa.astype(jnp.bfloat16),
               wb.astype(jnp.bfloat16),
               wc.astype(jnp.bfloat16))
    return weights, vec_slab


# ----------------------------------------------------------------------------
# wrapper
# ----------------------------------------------------------------------------

@functools.partial(jax.jit, static_argnames=("n_features", "z_dim"))
def george_sae_bn_forward(x, weights, vec_slab, *, n_features, z_dim):
    """Full autoencoder forward in one Pallas call (single block, no grid)."""
    nf = n_features
    b = x.shape[0]
    R, C, enc_p, dec_p, _ = _padded_dims(nf, z_dim)
    wa, wb, wc = weights

    # advisory cost hint (padded matmul dims actually executed)
    dims = [(nf, 256), (256, 128), (128, 128), (128, 128),
            (128, 128), (128, 128), (128, 256), (256, C)]
    flops = 2 * b * sum(k * n for k, n in dims)
    bytes_accessed = (x.size * 4 + (wa.size + wb.size + wc.size) * 2
                      + vec_slab.size * 4 + b * nf * 4)

    vmem = pl.BlockSpec(memory_space=pltpu.MemorySpace.VMEM)
    return pl.pallas_call(
        _make_kernel(nf, enc_p, dec_p),
        out_shape=jax.ShapeDtypeStruct((b, nf), jnp.float32),
        in_specs=[vmem] * 5,
        out_specs=vmem,
        compiler_params=pltpu.CompilerParams(vmem_limit_bytes=32 * 1024 * 1024),
        cost_estimate=pl.CostEstimate(flops=flops,
                                      transcendentals=sum(enc_p),
                                      bytes_accessed=bytes_accessed),
    )(x.astype(jnp.float32), wa, wb, wc, vec_slab)


# ----------------------------------------------------------------------------
# pure-JAX reference (same numeric policy: bf16 matmul inputs, f32 accum)
# ----------------------------------------------------------------------------

def _reference_forward(x, params):
    def dot(a, w):
        return jnp.dot(a.astype(jnp.bfloat16), w.astype(jnp.bfloat16),
                       preferred_element_type=jnp.float32)

    p = list(params)
    h = x.astype(jnp.float32)
    for _ in range(4):
        w, b, g, bt = p[:4]; p = p[4:]
        h = dot(h, w) + b
        h = jnp.where(h >= 0, h, _SLOPE * h)
        mean = jnp.mean(h, axis=0, keepdims=True)
        var = jnp.mean((h - mean) ** 2, axis=0, keepdims=True)
        h = (h - mean) / jnp.sqrt(var + _EPS) * g + bt
    for i in range(4):
        w, b = p[:2]; p = p[2:]
        h = dot(h, w) + b
        h = jnp.where(h >= 0, h, _SLOPE * h) if i < 3 else jnp.maximum(h, 0.0)
    return h


if __name__ == "__main__":
    n_features = 16
    z_dim = 4
    batch = 8

    key = jax.random.PRNGKey(0)
    k_params, k_x = jax.random.split(key)

    params = init_params(k_params, n_features, z_dim)
    weights, vec_slab = pack_params(params, n_features, z_dim)
    x = jax.random.normal(k_x, (batch, n_features), jnp.float32)

    out = george_sae_bn_forward(x, weights, vec_slab,
                                n_features=n_features, z_dim=z_dim)
    out = jax.block_until_ready(out)

    ref = _reference_forward(x, params)
    assert out.shape == (batch, n_features), out.shape
    assert jnp.all(jnp.isfinite(out))
    assert jnp.allclose(out, ref, atol=1e-3, rtol=1e-3), \
        float(jnp.max(jnp.abs(out - ref)))

    print("KERNEL_OK")
</pallas_src>

<mosaic_0001>
module attributes {stable_mosaic.version = 11 : i64} {
  func.func @kernel(%arg0: memref<8x16xf32, #tpu.memory_space<vmem>>, %arg1: memref<4x128x128xbf16, #tpu.memory_space<vmem>>, %arg2: memref<2x128x256xbf16, #tpu.memory_space<vmem>>, %arg3: memref<2x256x128xbf16, #tpu.memory_space<vmem>>, %arg4: memref<16x256xf32, #tpu.memory_space<vmem>>, %arg5: memref<8x16xf32, #tpu.memory_space<vmem>>) attributes {dimension_semantics = [], scalar_prefetch = 0 : i64, scratch_operands = 0 : i64, tpu.core_type = #tpu.core_type<tc>} {
    %c0 = arith.constant 0 : index
    %c0_0 = arith.constant 0 : index
    %0 = vector.load %arg0[%c0, %c0_0] : memref<8x16xf32, #tpu.memory_space<vmem>>, vector<8x16xf32>
    %c0_1 = arith.constant 0 : index
    %c0_2 = arith.constant 0 : index
    %c0_3 = arith.constant 0 : index
    %1 = vector.load %arg2[%c0_1, %c0_2, %c0_3] : memref<2x128x256xbf16, #tpu.memory_space<vmem>>, vector<1x16x256xbf16>
    %2 = vector.shape_cast %1 : vector<1x16x256xbf16> to vector<16x256xbf16>
    %3 = arith.truncf %0 : vector<8x16xf32> to vector<8x16xbf16>
    %cst = arith.constant dense<0.000000e+00> : vector<8x256xf32>
    %4 = tpu.matmul %3, %2, %cst {dimension_numbers = #tpu.dot_dimension_numbers<[1], [0], [0], [1], [0, 0, 1, 1], [], []>} : vector<8x16xbf16>, vector<16x256xbf16>, vector<8x256xf32> -> vector<8x256xf32>
    %c0_4 = arith.constant 0 : index
    %c0_5 = arith.constant 0 : index
    %5 = vector.load %arg4[%c0_4, %c0_5] : memref<16x256xf32, #tpu.memory_space<vmem>>, vector<1x256xf32>
    %6 = vector.broadcast %5 : vector<1x256xf32> to vector<8x256xf32>
    %7 = arith.addf %4, %6 : vector<8x256xf32>
    %cst_6 = arith.constant 0.00999999977 : f32
    %8 = vector.broadcast %cst_6 : f32 to vector<8x256xf32>
    %9 = arith.mulf %8, %7 : vector<8x256xf32>
    %10 = arith.maximumf %7, %9 : vector<8x256xf32>
    %c4 = arith.constant 4 : index
    %c0_7 = arith.constant 0 : index
    %11 = vector.load %arg4[%c4, %c0_7] : memref<16x256xf32, #tpu.memory_space<vmem>>, vector<1x256xf32>
    %c8 = arith.constant 8 : index
    %c0_8 = arith.constant 0 : index
    %12 = vector.load %arg4[%c8, %c0_8] : memref<16x256xf32, #tpu.memory_space<vmem>>, vector<1x256xf32>
    %cst_9 = arith.constant dense<0.000000e+00> : vector<256xf32>
    %13 = vector.multi_reduction <add>, %10, %cst_9 [0] : vector<8x256xf32> to vector<256xf32>
    %14 = vector.shape_cast %13 : vector<256xf32> to vector<1x256xf32>
    %cst_10 = arith.constant 1.250000e-01 : f32
    %15 = vector.broadcast %cst_10 : f32 to vector<1x256xf32>
    %16 = arith.mulf %14, %15 : vector<1x256xf32>
    %17 = vector.broadcast %16 : vector<1x256xf32> to vector<8x256xf32>
    %18 = arith.subf %10, %17 : vector<8x256xf32>
    %19 = arith.mulf %18, %18 : vector<8x256xf32>
    %cst_11 = arith.constant dense<0.000000e+00> : vector<256xf32>
    %20 = vector.multi_reduction <add>, %19, %cst_11 [0] : vector<8x256xf32> to vector<256xf32>
    %21 = vector.shape_cast %20 : vector<256xf32> to vector<1x256xf32>
    %cst_12 = arith.constant 1.250000e-01 : f32
    %22 = vector.broadcast %cst_12 : f32 to vector<1x256xf32>
    %23 = arith.mulf %21, %22 : vector<1x256xf32>
    %cst_13 = arith.constant 9.99999974E-6 : f32
    %24 = vector.broadcast %cst_13 : f32 to vector<1x256xf32>
    %25 = arith.addf %23, %24 : vector<1x256xf32>
    %26 = math.rsqrt %25 : vector<1x256xf32>
    %27 = arith.mulf %11, %26 : vector<1x256xf32>
    %28 = vector.broadcast %27 : vector<1x256xf32> to vector<8x256xf32>
    %29 = arith.mulf %18, %28 : vector<8x256xf32>
    %30 = vector.broadcast %12 : vector<1x256xf32> to vector<8x256xf32>
    %31 = arith.addf %29, %30 : vector<8x256xf32>
    %c0_14 = arith.constant 0 : index
    %c0_15 = arith.constant 0 : index
    %c0_16 = arith.constant 0 : index
    %32 = vector.load %arg3[%c0_14, %c0_15, %c0_16] : memref<2x256x128xbf16, #tpu.memory_space<vmem>>, vector<1x256x128xbf16>
    %33 = vector.shape_cast %32 : vector<1x256x128xbf16> to vector<256x128xbf16>
    %34 = arith.truncf %31 : vector<8x256xf32> to vector<8x256xbf16>
    %cst_17 = arith.constant dense<0.000000e+00> : vector<8x128xf32>
    %35 = tpu.matmul %34, %33, %cst_17 {dimension_numbers = #tpu.dot_dimension_numbers<[1], [0], [0], [1], [0, 0, 1, 1], [], []>} : vector<8x256xbf16>, vector<256x128xbf16>, vector<8x128xf32> -> vector<8x128xf32>
    %c1 = arith.constant 1 : index
    %c0_18 = arith.constant 0 : index
    %36 = vector.load %arg4[%c1, %c0_18] : memref<16x256xf32, #tpu.memory_space<vmem>>, vector<1x128xf32>
    %37 = vector.broadcast %36 : vector<1x128xf32> to vector<8x128xf32>
    %38 = arith.addf %35, %37 : vector<8x128xf32>
    %cst_19 = arith.constant 0.00999999977 : f32
    %39 = vector.broadcast %cst_19 : f32 to vector<8x128xf32>
    %40 = arith.mulf %39, %38 : vector<8x128xf32>
    %41 = arith.maximumf %38, %40 : vector<8x128xf32>
    %c5 = arith.constant 5 : index
    %c0_20 = arith.constant 0 : index
    %42 = vector.load %arg4[%c5, %c0_20] : memref<16x256xf32, #tpu.memory_space<vmem>>, vector<1x128xf32>
    %c9 = arith.constant 9 : index
    %c0_21 = arith.constant 0 : index
    %43 = vector.load %arg4[%c9, %c0_21] : memref<16x256xf32, #tpu.memory_space<vmem>>, vector<1x128xf32>
    %cst_22 = arith.constant dense<0.000000e+00> : vector<128xf32>
    %44 = vector.multi_reduction <add>, %41, %cst_22 [0] : vector<8x128xf32> to vector<128xf32>
    %45 = vector.shape_cast %44 : vector<128xf32> to vector<1x128xf32>
    %cst_23 = arith.constant 1.250000e-01 : f32
    %46 = vector.broadcast %cst_23 : f32 to vector<1x128xf32>
    %47 = arith.mulf %45, %46 : vector<1x128xf32>
    %48 = vector.broadcast %47 : vector<1x128xf32> to vector<8x128xf32>
    %49 = arith.subf %41, %48 : vector<8x128xf32>
    %50 = arith.mulf %49, %49 : vector<8x128xf32>
    %cst_24 = arith.constant dense<0.000000e+00> : vector<128xf32>
    %51 = vector.multi_reduction <add>, %50, %cst_24 [0] : vector<8x128xf32> to vector<128xf32>
    %52 = vector.shape_cast %51 : vector<128xf32> to vector<1x128xf32>
    %cst_25 = arith.constant 1.250000e-01 : f32
    %53 = vector.broadcast %cst_25 : f32 to vector<1x128xf32>
    %54 = arith.mulf %52, %53 : vector<1x128xf32>
    %cst_26 = arith.constant 9.99999974E-6 : f32
    %55 = vector.broadcast %cst_26 : f32 to vector<1x128xf32>
    %56 = arith.addf %54, %55 : vector<1x128xf32>
    %57 = math.rsqrt %56 : vector<1x128xf32>
    %58 = arith.mulf %42, %57 : vector<1x128xf32>
    %59 = vector.broadcast %58 : vector<1x128xf32> to vector<8x128xf32>
    %60 = arith.mulf %49, %59 : vector<8x128xf32>
    %61 = vector.broadcast %43 : vector<1x128xf32> to vector<8x128xf32>
    %62 = arith.addf %60, %61 : vector<8x128xf32>
    %c0_27 = arith.constant 0 : index
    %c0_28 = arith.constant 0 : index
    %c0_29 = arith.constant 0 : index
    %63 = vector.load %arg1[%c0_27, %c0_28, %c0_29] : memref<4x128x128xbf16, #tpu.memory_space<vmem>>, vector<1x128x128xbf16>
    %64 = vector.shape_cast %63 : vector<1x128x128xbf16> to vector<128x128xbf16>
    %65 = arith.truncf %62 : vector<8x128xf32> to vector<8x128xbf16>
    %cst_30 = arith.constant dense<0.000000e+00> : vector<8x128xf32>
    %66 = tpu.matmul %65, %64, %cst_30 {dimension_numbers = #tpu.dot_dimension_numbers<[1], [0], [0], [1], [0, 0, 1, 1], [], []>} : vector<8x128xbf16>, vector<128x128xbf16>, vector<8x128xf32> -> vector<8x128xf32>
    %c2 = arith.constant 2 : index
    %c0_31 = arith.constant 0 : index
    %67 = vector.load %arg4[%c2, %c0_31] : memref<16x256xf32, #tpu.memory_space<vmem>>, vector<1x128xf32>
    %68 = vector.broadcast %67 : vector<1x128xf32> to vector<8x128xf32>
    %69 = arith.addf %66, %68 : vector<8x128xf32>
    %cst_32 = arith.constant 0.00999999977 : f32
    %70 = vector.broadcast %cst_32 : f32 to vector<8x128xf32>
    %71 = arith.mulf %70, %69 : vector<8x128xf32>
    %72 = arith.maximumf %69, %71 : vector<8x128xf32>
    %c6 = arith.constant 6 : index
    %c0_33 = arith.constant 0 : index
    %73 = vector.load %arg4[%c6, %c0_33] : memref<16x256xf32, #tpu.memory_space<vmem>>, vector<1x128xf32>
    %c10 = arith.constant 10 : index
    %c0_34 = arith.constant 0 : index
    %74 = vector.load %arg4[%c10, %c0_34] : memref<16x256xf32, #tpu.memory_space<vmem>>, vector<1x128xf32>
    %cst_35 = arith.constant dense<0.000000e+00> : vector<128xf32>
    %75 = vector.multi_reduction <add>, %72, %cst_35 [0] : vector<8x128xf32> to vector<128xf32>
    %76 = vector.shape_cast %75 : vector<128xf32> to vector<1x128xf32>
    %cst_36 = arith.constant 1.250000e-01 : f32
    %77 = vector.broadcast %cst_36 : f32 to vector<1x128xf32>
    %78 = arith.mulf %76, %77 : vector<1x128xf32>
    %79 = vector.broadcast %78 : vector<1x128xf32> to vector<8x128xf32>
    %80 = arith.subf %72, %79 : vector<8x128xf32>
    %81 = arith.mulf %80, %80 : vector<8x128xf32>
    %cst_37 = arith.constant dense<0.000000e+00> : vector<128xf32>
    %82 = vector.multi_reduction <add>, %81, %cst_37 [0] : vector<8x128xf32> to vector<128xf32>
    %83 = vector.shape_cast %82 : vector<128xf32> to vector<1x128xf32>
    %cst_38 = arith.constant 1.250000e-01 : f32
    %84 = vector.broadcast %cst_38 : f32 to vector<1x128xf32>
    %85 = arith.mulf %83, %84 : vector<1x128xf32>
    %cst_39 = arith.constant 9.99999974E-6 : f32
    %86 = vector.broadcast %cst_39 : f32 to vector<1x128xf32>
    %87 = arith.addf %85, %86 : vector<1x128xf32>
    %88 = math.rsqrt %87 : vector<1x128xf32>
    %89 = arith.mulf %73, %88 : vector<1x128xf32>
    %90 = vector.broadcast %89 : vector<1x128xf32> to vector<8x128xf32>
    %91 = arith.mulf %80, %90 : vector<8x128xf32>
    %92 = vector.broadcast %74 : vector<1x128xf32> to vector<8x128xf32>
    %93 = arith.addf %91, %92 : vector<8x128xf32>
    %c1_40 = arith.constant 1 : index
    %c0_41 = arith.constant 0 : index
    %c0_42 = arith.constant 0 : index
    %94 = vector.load %arg1[%c1_40, %c0_41, %c0_42] : memref<4x128x128xbf16, #tpu.memory_space<vmem>>, vector<1x128x128xbf16>
    %95 = vector.shape_cast %94 : vector<1x128x128xbf16> to vector<128x128xbf16>
    %96 = arith.truncf %93 : vector<8x128xf32> to vector<8x128xbf16>
    %cst_43 = arith.constant dense<0.000000e+00> : vector<8x128xf32>
    %97 = tpu.matmul %96, %95, %cst_43 {dimension_numbers = #tpu.dot_dimension_numbers<[1], [0], [0], [1], [0, 0, 1, 1], [], []>} : vector<8x128xbf16>, vector<128x128xbf16>, vector<8x128xf32> -> vector<8x128xf32>
    %c3 = arith.constant 3 : index
    %c0_44 = arith.constant 0 : index
    %98 = vector.load %arg4[%c3, %c0_44] : memref<16x256xf32, #tpu.memory_space<vmem>>, vector<1x128xf32>
    %99 = vector.broadcast %98 : vector<1x128xf32> to vector<8x128xf32>
    %100 = arith.addf %97, %99 : vector<8x128xf32>
    %cst_45 = arith.constant 0.00999999977 : f32
    %101 = vector.broadcast %cst_45 : f32 to vector<8x128xf32>
    %102 = arith.mulf %101, %100 : vector<8x128xf32>
    %103 = arith.maximumf %100, %102 : vector<8x128xf32>
    %c7 = arith.constant 7 : index
    %c0_46 = arith.constant 0 : index
    %104 = vector.load %arg4[%c7, %c0_46] : memref<16x256xf32, #tpu.memory_space<vmem>>, vector<1x128xf32>
    %c11 = arith.constant 11 : index
    %c0_47 = arith.constant 0 : index
    %105 = vector.load %arg4[%c11, %c0_47] : memref<16x256xf32, #tpu.memory_space<vmem>>, vector<1x128xf32>
    %cst_48 = arith.constant dense<0.000000e+00> : vector<128xf32>
    %106 = vector.multi_reduction <add>, %103, %cst_48 [0] : vector<8x128xf32> to vector<128xf32>
    %107 = vector.shape_cast %106 : vector<128xf32> to vector<1x128xf32>
    %cst_49 = arith.constant 1.250000e-01 : f32
    %108 = vector.broadcast %cst_49 : f32 to vector<1x128xf32>
    %109 = arith.mulf %107, %108 : vector<1x128xf32>
    %110 = vector.broadcast %109 : vector<1x128xf32> to vector<8x128xf32>
    %111 = arith.subf %103, %110 : vector<8x128xf32>
    %112 = arith.mulf %111, %111 : vector<8x128xf32>
    %cst_50 = arith.constant dense<0.000000e+00> : vector<128xf32>
    %113 = vector.multi_reduction <add>, %112, %cst_50 [0] : vector<8x128xf32> to vector<128xf32>
    %114 = vector.shape_cast %113 : vector<128xf32> to vector<1x128xf32>
    %cst_51 = arith.constant 1.250000e-01 : f32
    %115 = vector.broadcast %cst_51 : f32 to vector<1x128xf32>
    %116 = arith.mulf %114, %115 : vector<1x128xf32>
    %cst_52 = arith.constant 9.99999974E-6 : f32
    %117 = vector.broadcast %cst_52 : f32 to vector<1x128xf32>
    %118 = arith.addf %116, %117 : vector<1x128xf32>
    %119 = math.rsqrt %118 : vector<1x128xf32>
    %120 = arith.mulf %104, %119 : vector<1x128xf32>
    %121 = vector.broadcast %120 : vector<1x128xf32> to vector<8x128xf32>
    %122 = arith.mulf %111, %121 : vector<8x128xf32>
    %123 = vector.broadcast %105 : vector<1x128xf32> to vector<8x128xf32>
    %124 = arith.addf %122, %123 : vector<8x128xf32>
    %c2_53 = arith.constant 2 : index
    %c0_54 = arith.constant 0 : index
    %c0_55 = arith.constant 0 : index
    %125 = vector.load %arg1[%c2_53, %c0_54, %c0_55] : memref<4x128x128xbf16, #tpu.memory_space<vmem>>, vector<1x128x128xbf16>
    %126 = vector.shape_cast %125 : vector<1x128x128xbf16> to vector<128x128xbf16>
    %127 = arith.truncf %124 : vector<8x128xf32> to vector<8x128xbf16>
    %cst_56 = arith.constant dense<0.000000e+00> : vector<8x128xf32>
    %128 = tpu.matmul %127, %126, %cst_56 {dimension_numbers = #tpu.dot_dimension_numbers<[1], [0], [0], [1], [0, 0, 1, 1], [], []>} : vector<8x128xbf16>, vector<128x128xbf16>, vector<8x128xf32> -> vector<8x128xf32>
    %c12 = arith.constant 12 : index
    %c0_57 = arith.constant 0 : index
    %129 = vector.load %arg4[%c12, %c0_57] : memref<16x256xf32, #tpu.memory_space<vmem>>, vector<1x128xf32>
    %130 = vector.broadcast %129 : vector<1x128xf32> to vector<8x128xf32>
    %131 = arith.addf %128, %130 : vector<8x128xf32>
    %cst_58 = arith.constant 0.00999999977 : f32
    %132 = vector.broadcast %cst_58 : f32 to vector<8x128xf32>
    %133 = arith.mulf %132, %131 : vector<8x128xf32>
    %134 = arith.maximumf %131, %133 : vector<8x128xf32>
    %c3_59 = arith.constant 3 : index
    %c0_60 = arith.constant 0 : index
    %c0_61 = arith.constant 0 : index
    %135 = vector.load %arg1[%c3_59, %c0_60, %c0_61] : memref<4x128x128xbf16, #tpu.memory_space<vmem>>, vector<1x128x128xbf16>
    %136 = vector.shape_cast %135 : vector<1x128x128xbf16> to vector<128x128xbf16>
    %137 = arith.truncf %134 : vector<8x128xf32> to vector<8x128xbf16>
    %cst_62 = arith.constant dense<0.000000e+00> : vector<8x128xf32>
    %138 = tpu.matmul %137, %136, %cst_62 {dimension_numbers = #tpu.dot_dimension_numbers<[1], [0], [0], [1], [0, 0, 1, 1], [], []>} : vector<8x128xbf16>, vector<128x128xbf16>, vector<8x128xf32> -> vector<8x128xf32>
    %c13 = arith.constant 13 : index
    %c0_63 = arith.constant 0 : index
    %139 = vector.load %arg4[%c13, %c0_63] : memref<16x256xf32, #tpu.memory_space<vmem>>, vector<1x128xf32>
    %140 = vector.broadcast %139 : vector<1x128xf32> to vector<8x128xf32>
    %141 = arith.addf %138, %140 : vector<8x128xf32>
    %cst_64 = arith.constant 0.00999999977 : f32
    %142 = vector.broadcast %cst_64 : f32 to vector<8x128xf32>
    %143 = arith.mulf %142, %141 : vector<8x128xf32>
    %144 = arith.maximumf %141, %143 : vector<8x128xf32>
    %c1_65 = arith.constant 1 : index
    %c0_66 = arith.constant 0 : index
    %c0_67 = arith.constant 0 : index
    %145 = vector.load %arg2[%c1_65, %c0_66, %c0_67] : memref<2x128x256xbf16, #tpu.memory_space<vmem>>, vector<1x128x256xbf16>
    %146 = vector.shape_cast %145 : vector<1x128x256xbf16> to vector<128x256xbf16>
    %147 = arith.truncf %144 : vector<8x128xf32> to vector<8x128xbf16>
    %cst_68 = arith.constant dense<0.000000e+00> : vector<8x256xf32>
    %148 = tpu.matmul %147, %146, %cst_68 {dimension_numbers = #tpu.dot_dimension_numbers<[1], [0], [0], [1], [0, 0, 1, 1], [], []>} : vector<8x128xbf16>, vector<128x256xbf16>, vector<8x256xf32> -> vector<8x256xf32>
    %c14 = arith.constant 14 : index
    %c0_69 = arith.constant 0 : index
    %149 = vector.load %arg4[%c14, %c0_69] : memref<16x256xf32, #tpu.memory_space<vmem>>, vector<1x256xf32>
    %150 = vector.broadcast %149 : vector<1x256xf32> to vector<8x256xf32>
    %151 = arith.addf %148, %150 : vector<8x256xf32>
    %cst_70 = arith.constant 0.00999999977 : f32
    %152 = vector.broadcast %cst_70 : f32 to vector<8x256xf32>
    %153 = arith.mulf %152, %151 : vector<8x256xf32>
    %154 = arith.maximumf %151, %153 : vector<8x256xf32>
    %c1_71 = arith.constant 1 : index
    %c0_72 = arith.constant 0 : index
    %c0_73 = arith.constant 0 : index
    %155 = vector.load %arg3[%c1_71, %c0_72, %c0_73] : memref<2x256x128xbf16, #tpu.memory_space<vmem>>, vector<1x256x128xbf16>
    %156 = vector.shape_cast %155 : vector<1x256x128xbf16> to vector<256x128xbf16>
    %157 = arith.truncf %154 : vector<8x256xf32> to vector<8x256xbf16>
    %cst_74 = arith.constant dense<0.000000e+00> : vector<8x128xf32>
    %158 = tpu.matmul %157, %156, %cst_74 {dimension_numbers = #tpu.dot_dimension_numbers<[1], [0], [0], [1], [0, 0, 1, 1], [], []>} : vector<8x256xbf16>, vector<256x128xbf16>, vector<8x128xf32> -> vector<8x128xf32>
    %c15 = arith.constant 15 : index
    %c0_75 = arith.constant 0 : index
    %159 = vector.load %arg4[%c15, %c0_75] : memref<16x256xf32, #tpu.memory_space<vmem>>, vector<1x128xf32>
    %160 = vector.broadcast %159 : vector<1x128xf32> to vector<8x128xf32>
    %161 = arith.addf %158, %160 : vector<8x128xf32>
    %cst_76 = arith.constant 0.000000e+00 : f32
    %162 = vector.broadcast %cst_76 : f32 to vector<8x128xf32>
    %163 = arith.maximumf %161, %162 : vector<8x128xf32>
    %164 = vector.extract_strided_slice %163 {offsets = [0, 0], sizes = [8, 16], strides = [1, 1]} : vector<8x128xf32> to vector<8x16xf32>
    %c0_77 = arith.constant 0 : index
    %c0_78 = arith.constant 0 : index
    %165 = vector.load %arg5[%c0_77, %c0_78] : memref<8x16xf32, #tpu.memory_space<vmem>>, vector<8x16xf32>
    tpu.vector_store %arg5[%c0_77, %c0_78], %164 {strides = array<i32>} : memref<8x16xf32, #tpu.memory_space<vmem>>, vector<8x16xf32>,
    return
  }
}

</mosaic_0001>

<llo_original>
// kernel: george_sae_bn_forward.1
$region0: #{george_sae_bn_forward.1}
  #allocation0 [shape = 'u32[]', space=smem, size = 0x4, offset = 0x4, fixed_abs, tag = 'smem constant byte address 0x4 - core index']
  #allocation1 [shape = 'u32[72,128]{1,0:T(1,128)}', space=vmem, size = 0x9000, scoped, tag = 'internal scratch']
  %s0 = inlined_call_operand.hbm [shape: f32[8,16], index: 0, kind: input, shape index: {}]
  %s1 = inlined_call_operand.hbm [shape: bf16[4,128,128], index: 1, kind: input, shape index: {}]
  %s2 = inlined_call_operand.hbm [shape: bf16[2,128,256], index: 2, kind: input, shape index: {}]
  %s3 = inlined_call_operand.hbm [shape: bf16[2,256,128], index: 3, kind: input, shape index: {}]
  %s4 = inlined_call_operand.hbm [shape: f32[16,256], index: 4, kind: input, shape index: {}]
  %s5 = inlined_call_operand.hbm [shape: f32[8,16], index: 5, kind: output, shape index: {}]
  %s6 = sld [smem:[#allocation0]]
  $region50: #{george_sae_bn_forward.1} parent=0
    _
  %s8 = ssub.s32 1, %s6
  %s9 = scalar_select 0, %s8, %s6
  $region1: #{george_sae_bn_forward.1} parent=0
    #allocation2 [shape = 'u8[4096]{0}', space=vmem, size = 0x1000, scoped, tag = 'input window, operand 0, single buffered']
    #allocation3 [shape = 's32[1]{0}', space=sflag, size = 0x4, scoped, tag = 'scoped memory for george_sae_bn_forward.1']
    #allocation4 [shape = 's32[1]{0}', space=sflag, size = 0x4, scoped, tag = 'scoped memory for george_sae_bn_forward.1']
    #allocation5 [shape = 'u8[131072]{0}', space=vmem, size = 0x20000, scoped, tag = 'input window, operand 1, single buffered']
    #allocation6 [shape = 's32[1]{0}', space=sflag, size = 0x4, scoped, tag = 'scoped memory for george_sae_bn_forward.1']
    #allocation7 [shape = 'u8[131072]{0}', space=vmem, size = 0x20000, scoped, tag = 'input window, operand 2, single buffered']
    #allocation8 [shape = 'u8[131072]{0}', space=vmem, size = 0x20000, scoped, tag = 'input window, operand 3, single buffered']
    #allocation9 [shape = 's32[1]{0}', space=sflag, size = 0x4, scoped, tag = 'scoped memory for george_sae_bn_forward.1']
    #allocation10 [shape = 'u8[16384]{0}', space=vmem, size = 0x4000, scoped, tag = 'input window, operand 4, single buffered']
    #allocation11 [shape = 'u8[4096]{0}', space=vmem, size = 0x1000, scoped, tag = 'output window, operand 0, single buffered']
    %10 = vsyncpa [#allocation3], 0
    %11 = vsyncpa [#allocation6], 0
    %12 = vsyncpa [#allocation9], 0
    %13 = vsyncpa [#allocation4], 0
    // Predicated region
    $region2: #{george_sae_bn_forward.1} parent=1 // pred_check
      _
    $region3: #{george_sae_bn_forward.1} parent=1 // pred_check_branch
      %15 = sbr.rel (0) target = $region5
    $region4: #{george_sae_bn_forward.1} parent=1 // pred_region
      %17 = vsyncadd [#allocation3], 0
      %s19 = sshll.u32 %s0, 4
      %s20 = int_to_ptr.hbm [resolvable:$true] %s19
      %s21 = sshll.u32 [#allocation2], 4
      %s22 = int_to_ptr.vmem [resolvable:$true] %s21
      %24 = dma.hbm_to_vmem [thread:$0]  %s20, 128, %s22, [#allocation3]
    $region5: #{george_sae_bn_forward.1} parent=1 // pred_fallthru
      _
    // Predicated region
    $region6: #{george_sae_bn_forward.1} parent=1 // pred_check
      _
    $region7: #{george_sae_bn_forward.1} parent=1 // pred_check_branch
      %26 = sbr.rel (0) target = $region9
    $region8: #{george_sae_bn_forward.1} parent=1 // pred_region
      %28 = vsyncadd [#allocation6], 0
      %s29 = sshll.u32 %s1, 4
      %s30 = int_to_ptr.hbm [resolvable:$true] %s29
      %s31 = sshll.u32 [#allocation5], 4
      %s32 = int_to_ptr.vmem [resolvable:$true] %s31
      %37 = dma.hbm_to_vmem [thread:$0]  %s30, 4096, %s32, [#allocation6], 64, 64, 4
    $region9: #{george_sae_bn_forward.1} parent=1 // pred_fallthru
      _
    // Predicated region
    $region10: #{george_sae_bn_forward.1} parent=1 // pred_check
      _
    $region11: #{george_sae_bn_forward.1} parent=1 // pred_check_branch
      %39 = sbr.rel (0) target = $region13
    $region12: #{george_sae_bn_forward.1} parent=1 // pred_region
      %41 = vsyncadd [#allocation6], 0
      %s42 = sshll.u32 %s2, 4
      %s43 = int_to_ptr.hbm [resolvable:$true] %s42
      %s44 = sshll.u32 [#allocation7], 4
      %s45 = int_to_ptr.vmem [resolvable:$true] %s44
      %50 = dma.hbm_to_vmem [thread:$0]  %s43, 4096, %s45, [#allocation6], 128, 128, 8
    $region13: #{george_sae_bn_forward.1} parent=1 // pred_fallthru
      _
    // Predicated region
    $region14: #{george_sae_bn_forward.1} parent=1 // pred_check
      _
    $region15: #{george_sae_bn_forward.1} parent=1 // pred_check_branch
      %52 = sbr.rel (0) target = $region17
    $region16: #{george_sae_bn_forward.1} parent=1 // pred_region
      %54 = vsyncadd [#allocation9], 0
      %s55 = sshll.u32 %s3, 4
      %s56 = int_to_ptr.hbm [resolvable:$true] %s55
      %s57 = sshll.u32 [#allocation8], 4
      %s58 = int_to_ptr.vmem [resolvable:$true] %s57
      %63 = dma.hbm_to_vmem [thread:$0]  %s56, 4096, %s58, [#allocation9], 64, 64, 4
    $region17: #{george_sae_bn_forward.1} parent=1 // pred_fallthru
      _
    // Predicated region
    $region18: #{george_sae_bn_forward.1} parent=1 // pred_check
      _
    $region19: #{george_sae_bn_forward.1} parent=1 // pred_check_branch
      %65 = sbr.rel (0) target = $region21
    $region20: #{george_sae_bn_forward.1} parent=1 // pred_region
      %67 = vsyncadd [#allocation9], 0
      %s68 = sshll.u32 %s4, 4
      %s69 = int_to_ptr.hbm [resolvable:$true] %s68
      %s70 = sshll.u32 [#allocation10], 4
      %s71 = int_to_ptr.vmem [resolvable:$true] %s70
      %76 = dma.hbm_to_vmem [thread:$0]  %s69, 512, %s71, [#allocation9], 256, 256, 16
    $region21: #{george_sae_bn_forward.1} parent=1 // pred_fallthru
      _
    // Predicated region
    $region22: #{george_sae_bn_forward.1} parent=1 // pred_check
      _
    $region23: #{george_sae_bn_forward.1} parent=1 // pred_check_branch
      %78 = sbr.rel (0) target = $region25
    $region24: #{george_sae_bn_forward.1} parent=1 // pred_region
      %80 = dma.done [#allocation3], 128
    $region25: #{george_sae_bn_forward.1} parent=1 // pred_fallthru
      _
    // Predicated region
    $region26: #{george_sae_bn_forward.1} parent=1 // pred_check
      _
    $region27: #{george_sae_bn_forward.1} parent=1 // pred_check_branch
      %82 = sbr.rel (0) target = $region29
    $region28: #{george_sae_bn_forward.1} parent=1 // pred_region
      %84 = dma.done [#allocation6], 4096
    $region29: #{george_sae_bn_forward.1} parent=1 // pred_fallthru
      _
    // Predicated region
    $region30: #{george_sae_bn_forward.1} parent=1 // pred_check
      _
    $region31: #{george_sae_bn_forward.1} parent=1 // pred_check_branch
      %86 = sbr.rel (0) target = $region33
    $region32: #{george_sae_bn_forward.1} parent=1 // pred_region
      %88 = dma.done [#allocation6], 4096
    $region33: #{george_sae_bn_forward.1} parent=1 // pred_fallthru
      _
    // Predicated region
    $region34: #{george_sae_bn_forward.1} parent=1 // pred_check
      _
    $region35: #{george_sae_bn_forward.1} parent=1 // pred_check_branch
      %90 = sbr.rel (0) target = $region37
    $region36: #{george_sae_bn_forward.1} parent=1 // pred_region
      %92 = dma.done [#allocation9], 4096
    $region37: #{george_sae_bn_forward.1} parent=1 // pred_fallthru
      _
    // Predicated region
    $region38: #{george_sae_bn_forward.1} parent=1 // pred_check
      _
    $region39: #{george_sae_bn_forward.1} parent=1 // pred_check_branch
      %94 = sbr.rel (0) target = $region41
    $region40: #{george_sae_bn_forward.1} parent=1 // pred_region
      %96 = dma.done [#allocation9], 512
    $region41: #{george_sae_bn_forward.1} parent=1 // pred_fallthru
      _
    %v98 = vld [vmem:[#allocation2] sm:$0xff]
    %v99 = vld [vmem:[#allocation7] sm:$0xff]
    %v100 = vld [vmem:[#allocation7 + $0x8] sm:$0xff]
    %v101 = vpack.c.bf16 %v98, %v98
    %v102 = vld [vmem:[#allocation10] ss:$8 sm:$0x3]
    %v104 = vperm.slane %v102, 0
    %v105 = vperm.slane %v102, 1
    %v110 = vunpack.c.l.b16 %v99
    %v111 = vunpack.c.h.b16 %v99
    %v112 = vunpack.c.l.b16 %v100
    %v113 = vunpack.c.h.b16 %v100
    %v114 = vpack.c.b16 %v112, %v110
    %v115 = vpack.c.b16 %v113, %v111
    %vm118 = vcmask 130048
    %v120 = vsel %vm118, %v101, 0
    %122 = vmatpush.bf16.msra.mxu0 0
    %123 = vmatpush.bf16.msra.mxu0 0
    %124 = vmatpush.bf16.msra.mxu0 0
    %125 = vmatpush.bf16.msra.mxu0 0
    %126 = vmatpush.bf16.msra.mxu0 0
    %127 = vmatpush.bf16.msra.mxu0 0
    %128 = vmatpush.bf16.msra.mxu0 0
    %129 = vmatpush.bf16.msra.mxu0 %v114
    %130 = vmatmul.bf16.gmra.mxu0 %v120
    %v131 = vpop.f32.mrf.mxu0
    %v132 = vadd.f32 %v104, %v131
    %v133 = vpop.f32.mrf.mxu0
    %134 = vdwg.mxu0
    %135 = vmatpush.bf16.msra.mxu0 0
    %136 = vmatpush.bf16.msra.mxu0 0
    %137 = vmatpush.bf16.msra.mxu0 0
    %138 = vmatpush.bf16.msra.mxu0 0
    %139 = vmatpush.bf16.msra.mxu0 0
    %140 = vmatpush.bf16.msra.mxu0 0
    %141 = vmatpush.bf16.msra.mxu0 0
    %142 = vmatpush.bf16.msra.mxu0 %v115
    %143 = vmatmul.bf16.gmra.mxu0 %v120
    %v144 = vpop.f32.mrf.mxu0
    %v145 = vadd.f32 %v105, %v144
    %v146 = vpop.f32.mrf.mxu0
    %147 = vdwg.mxu0
    %v148 = vmul.f32 %v132, 0.01
    %v149 = vmul.f32 %v145, 0.01
    %v150 = vmax.f32 %v132, %v148
    %v151 = vmax.f32 %v145, %v149
    %s152 = scalar_lea.vmem [#allocation10], 4
    %v153 = vld [vmem:[%s152] ss:$8 sm:$0x3]
    %s154 = scalar_lea.vmem [#allocation10], 16
    %v155 = vld [vmem:[%s154] ss:$8 sm:$0x3]
    %v156 = vrot.slane %v150, 4
    %v157 = vadd.f32 %v150, %v156
    %v158 = vrot.slane %v157, 2
    %v159 = vadd.f32 %v157, %v158
    %v160 = vrot.slane %v159, 1
    %v161 = vadd.f32 %v159, %v160
    %v162 = vrot.slane %v151, 4
    %v163 = vadd.f32 %v151, %v162
    %v164 = vrot.slane %v163, 2
    %v165 = vadd.f32 %v163, %v164
    %v166 = vrot.slane %v165, 1
    %v167 = vadd.f32 %v165, %v166
    %v168 = vmul.f32 %v161, 0.125
    %v169 = vmul.f32 %v167, 0.125
    %v170 = vsub.f32 %v150, %v168
    %v171 = vsub.f32 %v151, %v169
    %v172 = vmul.f32 %v170, %v170
    %v173 = vmul.f32 %v171, %v171
    %v174 = vrot.slane %v172, 4
    %v175 = vadd.f32 %v172, %v174
    %v176 = vrot.slane %v175, 2
    %v177 = vadd.f32 %v175, %v176
    %v178 = vrot.slane %v177, 1
    %v179 = vadd.f32 %v177, %v178
    %v180 = vrot.slane %v173, 4
    %v181 = vadd.f32 %v173, %v180
    %v182 = vrot.slane %v181, 2
    %v183 = vadd.f32 %v181, %v182
    %v184 = vrot.slane %v183, 1
    %v185 = vadd.f32 %v183, %v184
    %v186 = vmul.f32 %v179, 0.125
    %v187 = vmul.f32 %v185, 0.125
    %v188 = vadd.f32 %v186, 1e-05
    %v189 = vadd.f32 %v187, 1e-05
    %v190 = vrsqrt.pop %v188
    %v191 = vmul.f32 %v190, %v188
    %v192 = vmul.f32 %v191, %v190
    %v193 = vmul.f32 0.5, %v192
    %v194 = vsub.f32 1.5, %v193
    %v195 = vmul.f32 %v190, %v194
    %vm196 = vweird.f32 %v188
    %vm197 = vweird.f32 %v190
    %vm198 = vmor %vm196, %vm197
    %v199 = vsel %vm198, %v190, %v195
    %v200 = vrsqrt.pop %v189
    %v201 = vmul.f32 %v200, %v189
    %v202 = vmul.f32 %v201, %v200
    %v203 = vmul.f32 0.5, %v202
    %v204 = vsub.f32 1.5, %v203
    %v205 = vmul.f32 %v200, %v204
    %vm206 = vweird.f32 %v189
    %vm207 = vweird.f32 %v200
    %vm208 = vmor %vm206, %vm207
    %v209 = vsel %vm208, %v200, %v205
    %v212 = vrot.slane %v209, 7
    %vm213 = vcmask 1040384
    %v214 = vsel %vm213, %v199, %v212
    %v216 = vmul.f32 %v153, %v214
    %v218 = vperm.slane %v216, 0
    %v219 = vperm.slane %v216, 1
    %v222 = vmul.f32 %v170, %v218
    %v223 = vmul.f32 %v171, %v219
    %v225 = vperm.slane %v155, 0
    %v226 = vperm.slane %v155, 1
    %v229 = vadd.f32 %v222, %v225
    %v230 = vadd.f32 %v223, %v226
    %v231 = vld [vmem:[#allocation8] sm:$0xf]
    %v232 = vld [vmem:[#allocation8 + $0x4] sm:$0xf]
    %v233 = vld [vmem:[#allocation8 + $0x8] sm:$0xf]
    %v234 = vld [vmem:[#allocation8 + $0xc] sm:$0xf]
    %v235 = vld [vmem:[#allocation8 + $0x10] sm:$0xf]
    %v236 = vld [vmem:[#allocation8 + $0x14] sm:$0xf]
    %v237 = vld [vmem:[#allocation8 + $0x18] sm:$0xf]
    %v238 = vld [vmem:[#allocation8 + $0x1c] sm:$0xf]
    %v239 = vld [vmem:[#allocation8 + $0x20] sm:$0xf]
    %v240 = vld [vmem:[#allocation8 + $0x24] sm:$0xf]
    %v241 = vld [vmem:[#allocation8 + $0x28] sm:$0xf]
    %v242 = vld [vmem:[#allocation8 + $0x2c] sm:$0xf]
    %v243 = vld [vmem:[#allocation8 + $0x30] sm:$0xf]
    %v244 = vld [vmem:[#allocation8 + $0x34] sm:$0xf]
    %v245 = vld [vmem:[#allocation8 + $0x38] sm:$0xf]
    %v246 = vld [vmem:[#allocation8 + $0x3c] sm:$0xf]
    %v247 = vld [vmem:[#allocation8 + $0x40] sm:$0xf]
    %v248 = vld [vmem:[#allocation8 + $0x44] sm:$0xf]
    %v249 = vld [vmem:[#allocation8 + $0x48] sm:$0xf]
    %v250 = vld [vmem:[#allocation8 + $0x4c] sm:$0xf]
    %v251 = vld [vmem:[#allocation8 + $0x50] sm:$0xf]
    %v252 = vld [vmem:[#allocation8 + $0x54] sm:$0xf]
    %v253 = vld [vmem:[#allocation8 + $0x58] sm:$0xf]
    %v254 = vld [vmem:[#allocation8 + $0x5c] sm:$0xf]
    %v255 = vld [vmem:[#allocation8 + $0x60] sm:$0xf]
    %v256 = vld [vmem:[#allocation8 + $0x64] sm:$0xf]
    %v257 = vld [vmem:[#allocation8 + $0x68] sm:$0xf]
    %v258 = vld [vmem:[#allocation8 + $0x6c] sm:$0xf]
    %v259 = vld [vmem:[#allocation8 + $0x70] sm:$0xf]
    %v260 = vld [vmem:[#allocation8 + $0x74] sm:$0xf]
    %v261 = vld [vmem:[#allocation8 + $0x78] sm:$0xf]
    %v262 = vld [vmem:[#allocation8 + $0x7c] sm:$0xf]
    %v263 = vpack.c.bf16 %v229, %v229
    %v264 = vpack.c.bf16 %v230, %v230
    %v265 = vld [vmem:[#allocation10 + $0x1] ss:$0 sm:$0xff]
    %v298 = vunpack.c.l.b16 %v231
    %v299 = vunpack.c.l.b16 %v232
    %v300 = vunpack.c.l.b16 %v233
    %v301 = vunpack.c.l.b16 %v234
    %v302 = vunpack.c.l.b16 %v235
    %v303 = vunpack.c.l.b16 %v236
    %v304 = vunpack.c.l.b16 %v237
    %v305 = vunpack.c.l.b16 %v238
    %v306 = vunpack.c.l.b16 %v239
    %v307 = vunpack.c.l.b16 %v240
    %v308 = vunpack.c.l.b16 %v241
    %v309 = vunpack.c.l.b16 %v242
    %v310 = vunpack.c.l.b16 %v243
    %v311 = vunpack.c.l.b16 %v244
    %v312 = vunpack.c.l.b16 %v245
    %v313 = vunpack.c.l.b16 %v246
    %v314 = vunpack.c.l.b16 %v247
    %v315 = vunpack.c.l.b16 %v248
    %v316 = vunpack.c.l.b16 %v249
    %v317 = vunpack.c.l.b16 %v250
    %v318 = vunpack.c.l.b16 %v251
    %v319 = vunpack.c.l.b16 %v252
    %v320 = vunpack.c.l.b16 %v253
    %v321 = vunpack.c.l.b16 %v254
    %v322 = vunpack.c.l.b16 %v255
    %v323 = vunpack.c.l.b16 %v256
    %v324 = vunpack.c.l.b16 %v257
    %v325 = vunpack.c.l.b16 %v258
    %v326 = vunpack.c.l.b16 %v259
    %v327 = vunpack.c.l.b16 %v260
    %v328 = vunpack.c.l.b16 %v261
    %v329 = vunpack.c.l.b16 %v262
    %v330 = vpack.c.b16 %v299, %v298
    %v331 = vpack.c.b16 %v301, %v300
    %v332 = vpack.c.b16 %v303, %v302
    %v333 = vpack.c.b16 %v305, %v304
    %v334 = vpack.c.b16 %v307, %v306
    %v335 = vpack.c.b16 %v309, %v308
    %v336 = vpack.c.b16 %v311, %v310
    %v337 = vpack.c.b16 %v313, %v312
    %v338 = vpack.c.b16 %v315, %v314
    %v339 = vpack.c.b16 %v317, %v316
    %v340 = vpack.c.b16 %v319, %v318
    %v341 = vpack.c.b16 %v321, %v320
    %v342 = vpack.c.b16 %v323, %v322
    %v343 = vpack.c.b16 %v325, %v324
    %v344 = vpack.c.b16 %v327, %v326
    %v345 = vpack.c.b16 %v329, %v328
    %362 = vmatpush.bf16.msra.mxu0 %v337
    %363 = vmatpush.bf16.msra.mxu0 %v336
    %364 = vmatpush.bf16.msra.mxu0 %v335
    %365 = vmatpush.bf16.msra.mxu0 %v334
    %366 = vmatpush.bf16.msra.mxu0 %v333
    %367 = vmatpush.bf16.msra.mxu0 %v332
    %368 = vmatpush.bf16.msra.mxu0 %v331
    %369 = vmatpush.bf16.msra.mxu0 %v330
    %370 = vmatmul.bf16.gmra.mxu0 %v263
    %v371 = vpop.f32.mrf.mxu0
    %v372 = vadd.f32 %v265, %v371
    %v373 = vpop.f32.mrf.mxu0
    %374 = vdwg.mxu0
    %375 = vmatpush.bf16.msra.mxu0 %v345
    %376 = vmatpush.bf16.msra.mxu0 %v344
    %377 = vmatpush.bf16.msra.mxu0 %v343
    %378 = vmatpush.bf16.msra.mxu0 %v342
    %379 = vmatpush.bf16.msra.mxu0 %v341
    %380 = vmatpush.bf16.msra.mxu0 %v340
    %381 = vmatpush.bf16.msra.mxu0 %v339
    %382 = vmatpush.bf16.msra.mxu0 %v338
    %383 = vmatmul.bf16.gmra.mxu0 %v264
    %v384 = vpop.f32.mrf.mxu0
    %v385 = vadd.f32 %v372, %v384
    %v386 = vpop.f32.mrf.mxu0
    %387 = vdwg.mxu0
    %v388 = vmul.f32 %v385, 0.01
    %v389 = vmax.f32 %v385, %v388
    %v390 = vld [vmem:[#allocation10 + $0x5] ss:$0 sm:$0xff]
    %v391 = vld [vmem:[#allocation10 + $0x11] ss:$0 sm:$0xff]
    %v392 = vrot.slane %v389, 4
    %v393 = vadd.f32 %v389, %v392
    %v394 = vrot.slane %v393, 2
    %v395 = vadd.f32 %v393, %v394
    %v396 = vrot.slane %v395, 1
    %v397 = vadd.f32 %v395, %v396
    %v398 = vmul.f32 %v397, 0.125
    %v399 = vsub.f32 %v389, %v398
    %v400 = vmul.f32 %v399, %v399
    %v401 = vrot.slane %v400, 4
    %v402 = vadd.f32 %v400, %v401
    %v403 = vrot.slane %v402, 2
    %v404 = vadd.f32 %v402, %v403
    %v405 = vrot.slane %v404, 1
    %v406 = vadd.f32 %v404, %v405
    %v407 = vmul.f32 %v406, 0.125
    %v408 = vadd.f32 %v407, 1e-05
    %v409 = vrsqrt.pop %v408
    %v410 = vmul.f32 %v409, %v408
    %v411 = vmul.f32 %v410, %v409
    %v412 = vmul.f32 0.5, %v411
    %v413 = vsub.f32 1.5, %v412
    %v414 = vmul.f32 %v409, %v413
    %vm415 = vweird.f32 %v408
    %vm416 = vweird.f32 %v409
    %vm417 = vmor %vm415, %vm416
    %v418 = vsel %vm417, %v409, %v414
    %v419 = vmul.f32 %v390, %v418
    %v420 = vmul.f32 %v399, %v419
    %v421 = vadd.f32 %v420, %v391
    %v422 = vld [vmem:[#allocation5] sm:$0xf]
    %v423 = vld [vmem:[#allocation5 + $0x4] sm:$0xf]
    %v424 = vld [vmem:[#allocation5 + $0x8] sm:$0xf]
    %v425 = vld [vmem:[#allocation5 + $0xc] sm:$0xf]
    %v426 = vld [vmem:[#allocation5 + $0x10] sm:$0xf]
    %v427 = vld [vmem:[#allocation5 + $0x14] sm:$0xf]
    %v428 = vld [vmem:[#allocation5 + $0x18] sm:$0xf]
    %v429 = vld [vmem:[#allocation5 + $0x1c] sm:$0xf]
    %v430 = vld [vmem:[#allocation5 + $0x20] sm:$0xf]
    %v431 = vld [vmem:[#allocation5 + $0x24] sm:$0xf]
    %v432 = vld [vmem:[#allocation5 + $0x28] sm:$0xf]
    %v433 = vld [vmem:[#allocation5 + $0x2c] sm:$0xf]
    %v434 = vld [vmem:[#allocation5 + $0x30] sm:$0xf]
    %v435 = vld [vmem:[#allocation5 + $0x34] sm:$0xf]
    %v436 = vld [vmem:[#allocation5 + $0x38] sm:$0xf]
    %v437 = vld [vmem:[#allocation5 + $0x3c] sm:$0xf]
    %v438 = vpack.c.bf16 %v421, %v421
    %v439 = vld [vmem:[#allocation10 + $0x2] ss:$0 sm:$0xff]
    %v456 = vunpack.c.l.b16 %v422
    %v457 = vunpack.c.l.b16 %v423
    %v458 = vunpack.c.l.b16 %v424
    %v459 = vunpack.c.l.b16 %v425
    %v460 = vunpack.c.l.b16 %v426
    %v461 = vunpack.c.l.b16 %v427
    %v462 = vunpack.c.l.b16 %v428
    %v463 = vunpack.c.l.b16 %v429
    %v464 = vunpack.c.l.b16 %v430
    %v465 = vunpack.c.l.b16 %v431
    %v466 = vunpack.c.l.b16 %v432
    %v467 = vunpack.c.l.b16 %v433
    %v468 = vunpack.c.l.b16 %v434
    %v469 = vunpack.c.l.b16 %v435
    %v470 = vunpack.c.l.b16 %v436
    %v471 = vunpack.c.l.b16 %v437
    %v472 = vpack.c.b16 %v457, %v456
    %v473 = vpack.c.b16 %v459, %v458
    %v474 = vpack.c.b16 %v461, %v460
    %v475 = vpack.c.b16 %v463, %v462
    %v476 = vpack.c.b16 %v465, %v464
    %v477 = vpack.c.b16 %v467, %v466
    %v478 = vpack.c.b16 %v469, %v468
    %v479 = vpack.c.b16 %v471, %v470
    %488 = vmatpush.bf16.msra.mxu0 %v479
    %489 = vmatpush.bf16.msra.mxu0 %v478
    %490 = vmatpush.bf16.msra.mxu0 %v477
    %491 = vmatpush.bf16.msra.mxu0 %v476
    %492 = vmatpush.bf16.msra.mxu0 %v475
    %493 = vmatpush.bf16.msra.mxu0 %v474
    %494 = vmatpush.bf16.msra.mxu0 %v473
    %495 = vmatpush.bf16.msra.mxu0 %v472
    %496 = vmatmul.bf16.gmra.mxu0 %v438
    %v497 = vpop.f32.mrf.mxu0
    %v498 = vadd.f32 %v439, %v497
    %v499 = vpop.f32.mrf.mxu0
    %500 = vdwg.mxu0
    %v501 = vmul.f32 %v498, 0.01
    %v502 = vmax.f32 %v498, %v501
    %v503 = vld [vmem:[#allocation10 + $0x6] ss:$0 sm:$0xff]
    %v504 = vld [vmem:[#allocation10 + $0x12] ss:$0 sm:$0xff]
    %v505 = vrot.slane %v502, 4
    %v506 = vadd.f32 %v502, %v505
    %v507 = vrot.slane %v506, 2
    %v508 = vadd.f32 %v506, %v507
    %v509 = vrot.slane %v508, 1
    %v510 = vadd.f32 %v508, %v509
    %v511 = vmul.f32 %v510, 0.125
    %v512 = vsub.f32 %v502, %v511
    %v513 = vmul.f32 %v512, %v512
    %v514 = vrot.slane %v513, 4
    %v515 = vadd.f32 %v513, %v514
    %v516 = vrot.slane %v515, 2
    %v517 = vadd.f32 %v515, %v516
    %v518 = vrot.slane %v517, 1
    %v519 = vadd.f32 %v517, %v518
    %v520 = vmul.f32 %v519, 0.125
    %v521 = vadd.f32 %v520, 1e-05
    %v522 = vrsqrt.pop %v521
    %v523 = vmul.f32 %v522, %v521
    %v524 = vmul.f32 %v523, %v522
    %v525 = vmul.f32 0.5, %v524
    %v526 = vsub.f32 1.5, %v525
    %v527 = vmul.f32 %v522, %v526
    %vm528 = vweird.f32 %v521
    %vm529 = vweird.f32 %v522
    %vm530 = vmor %vm528, %vm529
    %v531 = vsel %vm530, %v522, %v527
    %v532 = vmul.f32 %v503, %v531
    %v533 = vmul.f32 %v512, %v532
    %v534 = vadd.f32 %v533, %v504
    %s535 = scalar_lea.vmem [#allocation5], 64
    %v536 = vld [vmem:[%s535] sm:$0xf]
    %v537 = vld [vmem:[%s535 + $0x4] sm:$0xf]
    %v538 = vld [vmem:[%s535 + $0x8] sm:$0xf]
    %v539 = vld [vmem:[%s535 + $0xc] sm:$0xf]
    %v540 = vld [vmem:[%s535 + $0x10] sm:$0xf]
    %v541 = vld [vmem:[%s535 + $0x14] sm:$0xf]
    %v542 = vld [vmem:[%s535 + $0x18] sm:$0xf]
    %v543 = vld [vmem:[%s535 + $0x1c] sm:$0xf]
    %v544 = vld [vmem:[%s535 + $0x20] sm:$0xf]
    %v545 = vld [vmem:[%s535 + $0x24] sm:$0xf]
    %v546 = vld [vmem:[%s535 + $0x28] sm:$0xf]
    %v547 = vld [vmem:[%s535 + $0x2c] sm:$0xf]
    %v548 = vld [vmem:[%s535 + $0x30] sm:$0xf]
    %v549 = vld [vmem:[%s535 + $0x34] sm:$0xf]
    %v550 = vld [vmem:[%s535 + $0x38] sm:$0xf]
    %v551 = vld [vmem:[%s535 + $0x3c] sm:$0xf]
    %v552 = vpack.c.bf16 %v534, %v534
    %v553 = vld [vmem:[#allocation10 + $0x3] ss:$0 sm:$0xff]
    %v570 = vunpack.c.l.b16 %v536
    %v571 = vunpack.c.l.b16 %v537
    %v572 = vunpack.c.l.b16 %v538
    %v573 = vunpack.c.l.b16 %v539
    %v574 = vunpack.c.l.b16 %v540
    %v575 = vunpack.c.l.b16 %v541
    %v576 = vunpack.c.l.b16 %v542
    %v577 = vunpack.c.l.b16 %v543
    %v578 = vunpack.c.l.b16 %v544
    %v579 = vunpack.c.l.b16 %v545
    %v580 = vunpack.c.l.b16 %v546
    %v581 = vunpack.c.l.b16 %v547
    %v582 = vunpack.c.l.b16 %v548
    %v583 = vunpack.c.l.b16 %v549
    %v584 = vunpack.c.l.b16 %v550
    %v585 = vunpack.c.l.b16 %v551
    %v586 = vpack.c.b16 %v571, %v570
    %v587 = vpack.c.b16 %v573, %v572
    %v588 = vpack.c.b16 %v575, %v574
    %v589 = vpack.c.b16 %v577, %v576
    %v590 = vpack.c.b16 %v579, %v578
    %v591 = vpack.c.b16 %v581, %v580
    %v592 = vpack.c.b16 %v583, %v582
    %v593 = vpack.c.b16 %v585, %v584
    %602 = vmatpush.bf16.msra.mxu0 %v593
    %603 = vmatpush.bf16.msra.mxu0 %v592
    %604 = vmatpush.bf16.msra.mxu0 %v591
    %605 = vmatpush.bf16.msra.mxu0 %v590
    %606 = vmatpush.bf16.msra.mxu0 %v589
    %607 = vmatpush.bf16.msra.mxu0 %v588
    %608 = vmatpush.bf16.msra.mxu0 %v587
    %609 = vmatpush.bf16.msra.mxu0 %v586
    %610 = vmatmul.bf16.gmra.mxu0 %v552
    %v611 = vpop.f32.mrf.mxu0
    %v612 = vadd.f32 %v553, %v611
    %v613 = vpop.f32.mrf.mxu0
    %614 = vdwg.mxu0
    %v615 = vmul.f32 %v612, 0.01
    %v616 = vmax.f32 %v612, %v615
    %v617 = vld [vmem:[#allocation10 + $0x7] ss:$0 sm:$0xff]
    %v618 = vld [vmem:[#allocation10 + $0x13] ss:$0 sm:$0xff]
    %v619 = vrot.slane %v616, 4
    %v620 = vadd.f32 %v616, %v619
    %v621 = vrot.slane %v620, 2
    %v622 = vadd.f32 %v620, %v621
    %v623 = vrot.slane %v622, 1
    %v624 = vadd.f32 %v622, %v623
    %v625 = vmul.f32 %v624, 0.125
    %v626 = vsub.f32 %v616, %v625
    %v627 = vmul.f32 %v626, %v626
    %v628 = vrot.slane %v627, 4
    %v629 = vadd.f32 %v627, %v628
    %v630 = vrot.slane %v629, 2
    %v631 = vadd.f32 %v629, %v630
    %v632 = vrot.slane %v631, 1
    %v633 = vadd.f32 %v631, %v632
    %v634 = vmul.f32 %v633, 0.125
    %v635 = vadd.f32 %v634, 1e-05
    %v636 = vrsqrt.pop %v635
    %v637 = vmul.f32 %v636, %v635
    %v638 = vmul.f32 %v637, %v636
    %v639 = vmul.f32 0.5, %v638
    %v640 = vsub.f32 1.5, %v639
    %v641 = vmul.f32 %v636, %v640
    %vm642 = vweird.f32 %v635
    %vm643 = vweird.f32 %v636
    %vm644 = vmor %vm642, %vm643
    %v645 = vsel %vm644, %v636, %v641
    %v646 = vmul.f32 %v617, %v645
    %v647 = vmul.f32 %v626, %v646
    %v648 = vadd.f32 %v647, %v618
    %s649 = scalar_lea.vmem [#allocation5], 128
    %v650 = vld [vmem:[%s649] sm:$0xf]
    %v651 = vld [vmem:[%s649 + $0x4] sm:$0xf]
    %v652 = vld [vmem:[%s649 + $0x8] sm:$0xf]
    %v653 = vld [vmem:[%s649 + $0xc] sm:$0xf]
    %v654 = vld [vmem:[%s649 + $0x10] sm:$0xf]
    %v655 = vld [vmem:[%s649 + $0x14] sm:$0xf]
    %v656 = vld [vmem:[%s649 + $0x18] sm:$0xf]
    %v657 = vld [vmem:[%s649 + $0x1c] sm:$0xf]
    %v658 = vld [vmem:[%s649 + $0x20] sm:$0xf]
    %v659 = vld [vmem:[%s649 + $0x24] sm:$0xf]
    %v660 = vld [vmem:[%s649 + $0x28] sm:$0xf]
    %v661 = vld [vmem:[%s649 + $0x2c] sm:$0xf]
    %v662 = vld [vmem:[%s649 + $0x30] sm:$0xf]
    %v663 = vld [vmem:[%s649 + $0x34] sm:$0xf]
    %v664 = vld [vmem:[%s649 + $0x38] sm:$0xf]
    %v665 = vld [vmem:[%s649 + $0x3c] sm:$0xf]
    %v666 = vpack.c.bf16 %v648, %v648
    %v667 = vld [vmem:[#allocation10 + $0x14] ss:$0 sm:$0xff]
    %v684 = vunpack.c.l.b16 %v650
    %v685 = vunpack.c.l.b16 %v651
    %v686 = vunpack.c.l.b16 %v652
    %v687 = vunpack.c.l.b16 %v653
    %v688 = vunpack.c.l.b16 %v654
    %v689 = vunpack.c.l.b16 %v655
    %v690 = vunpack.c.l.b16 %v656
    %v691 = vunpack.c.l.b16 %v657
    %v692 = vunpack.c.l.b16 %v658
    %v693 = vunpack.c.l.b16 %v659
    %v694 = vunpack.c.l.b16 %v660
    %v695 = vunpack.c.l.b16 %v661
    %v696 = vunpack.c.l.b16 %v662
    %v697 = vunpack.c.l.b16 %v663
    %v698 = vunpack.c.l.b16 %v664
    %v699 = vunpack.c.l.b16 %v665
    %v700 = vpack.c.b16 %v685, %v684
    %v701 = vpack.c.b16 %v687, %v686
    %v702 = vpack.c.b16 %v689, %v688
    %v703 = vpack.c.b16 %v691, %v690
    %v704 = vpack.c.b16 %v693, %v692
    %v705 = vpack.c.b16 %v695, %v694
    %v706 = vpack.c.b16 %v697, %v696
    %v707 = vpack.c.b16 %v699, %v698
    %716 = vmatpush.bf16.msra.mxu0 %v707
    %717 = vmatpush.bf16.msra.mxu0 %v706
    %718 = vmatpush.bf16.msra.mxu0 %v705
    %719 = vmatpush.bf16.msra.mxu0 %v704
    %720 = vmatpush.bf16.msra.mxu0 %v703
    %721 = vmatpush.bf16.msra.mxu0 %v702
    %722 = vmatpush.bf16.msra.mxu0 %v701
    %723 = vmatpush.bf16.msra.mxu0 %v700
    %724 = vmatmul.bf16.gmra.mxu0 %v666
    %v725 = vpop.f32.mrf.mxu0
    %v726 = vadd.f32 %v667, %v725
    %v727 = vpop.f32.mrf.mxu0
    %728 = vdwg.mxu0
    %v729 = vmul.f32 %v726, 0.01
    %v730 = vmax.f32 %v726, %v729
    %s731 = scalar_lea.vmem [#allocation5], 192
    %v732 = vld [vmem:[%s731] sm:$0xf]
    %v733 = vld [vmem:[%s731 + $0x4] sm:$0xf]
    %v734 = vld [vmem:[%s731 + $0x8] sm:$0xf]
    %v735 = vld [vmem:[%s731 + $0xc] sm:$0xf]
    %v736 = vld [vmem:[%s731 + $0x10] sm:$0xf]
    %v737 = vld [vmem:[%s731 + $0x14] sm:$0xf]
    %v738 = vld [vmem:[%s731 + $0x18] sm:$0xf]
    %v739 = vld [vmem:[%s731 + $0x1c] sm:$0xf]
    %v740 = vld [vmem:[%s731 + $0x20] sm:$0xf]
    %v741 = vld [vmem:[%s731 + $0x24] sm:$0xf]
    %v742 = vld [vmem:[%s731 + $0x28] sm:$0xf]
    %v743 = vld [vmem:[%s731 + $0x2c] sm:$0xf]
    %v744 = vld [vmem:[%s731 + $0x30] sm:$0xf]
    %v745 = vld [vmem:[%s731 + $0x34] sm:$0xf]
    %v746 = vld [vmem:[%s731 + $0x38] sm:$0xf]
    %v747 = vld [vmem:[%s731 + $0x3c] sm:$0xf]
    %v748 = vpack.c.bf16 %v730, %v730
    %v749 = vld [vmem:[#allocation10 + $0x15] ss:$0 sm:$0xff]
    %v766 = vunpack.c.l.b16 %v732
    %v767 = vunpack.c.l.b16 %v733
    %v768 = vunpack.c.l.b16 %v734
    %v769 = vunpack.c.l.b16 %v735
    %v770 = vunpack.c.l.b16 %v736
    %v771 = vunpack.c.l.b16 %v737
    %v772 = vunpack.c.l.b16 %v738
    %v773 = vunpack.c.l.b16 %v739
    %v774 = vunpack.c.l.b16 %v740
    %v775 = vunpack.c.l.b16 %v741
    %v776 = vunpack.c.l.b16 %v742
    %v777 = vunpack.c.l.b16 %v743
    %v778 = vunpack.c.l.b16 %v744
    %v779 = vunpack.c.l.b16 %v745
    %v780 = vunpack.c.l.b16 %v746
    %v781 = vunpack.c.l.b16 %v747
    %v782 = vpack.c.b16 %v767, %v766
    %v783 = vpack.c.b16 %v769, %v768
    %v784 = vpack.c.b16 %v771, %v770
    %v785 = vpack.c.b16 %v773, %v772
    %v786 = vpack.c.b16 %v775, %v774
    %v787 = vpack.c.b16 %v777, %v776
    %v788 = vpack.c.b16 %v779, %v778
    %v789 = vpack.c.b16 %v781, %v780
    %798 = vmatpush.bf16.msra.mxu0 %v789
    %799 = vmatpush.bf16.msra.mxu0 %v788
    %800 = vmatpush.bf16.msra.mxu0 %v787
    %801 = vmatpush.bf16.msra.mxu0 %v786
    %802 = vmatpush.bf16.msra.mxu0 %v785
    %803 = vmatpush.bf16.msra.mxu0 %v784
    %804 = vmatpush.bf16.msra.mxu0 %v783
    %805 = vmatpush.bf16.msra.mxu0 %v782
    %806 = vmatmul.bf16.gmra.mxu0 %v748
    %v807 = vpop.f32.mrf.mxu0
    %v808 = vadd.f32 %v749, %v807
    %v809 = vpop.f32.mrf.mxu0
    %810 = vdwg.mxu0
    %v811 = vmul.f32 %v808, 0.01
    %v812 = vmax.f32 %v808, %v811
    %s813 = scalar_lea.vmem [#allocation7], 128
    %v814 = vld [vmem:[%s813] sm:$0xff]
    %v815 = vld [vmem:[%s813 + $0x8] sm:$0xff]
    %v816 = vld [vmem:[%s813 + $0x10] sm:$0xff]
    %v817 = vld [vmem:[%s813 + $0x18] sm:$0xff]
    %v818 = vld [vmem:[%s813 + $0x20] sm:$0xff]
    %v819 = vld [vmem:[%s813 + $0x28] sm:$0xff]
    %v820 = vld [vmem:[%s813 + $0x30] sm:$0xff]
    %v821 = vld [vmem:[%s813 + $0x38] sm:$0xff]
    %v822 = vld [vmem:[%s813 + $0x40] sm:$0xff]
    %v823 = vld [vmem:[%s813 + $0x48] sm:$0xff]
    %v824 = vld [vmem:[%s813 + $0x50] sm:$0xff]
    %v825 = vld [vmem:[%s813 + $0x58] sm:$0xff]
    %v826 = vld [vmem:[%s813 + $0x60] sm:$0xff]
    %v827 = vld [vmem:[%s813 + $0x68] sm:$0xff]
    %v828 = vld [vmem:[%s813 + $0x70] sm:$0xff]
    %v829 = vld [vmem:[%s813 + $0x78] sm:$0xff]
    %v830 = vpack.c.bf16 %v812, %v812
    %s831 = scalar_lea.vmem [#allocation10], 22
    %v832 = vld [vmem:[%s831] ss:$8 sm:$0x3]
    %v834 = vperm.slane %v832, 0
    %v835 = vperm.slane %v832, 1
    %v854 = vunpack.c.l.b16 %v814
    %v855 = vunpack.c.h.b16 %v814
    %v856 = vunpack.c.l.b16 %v815
    %v857 = vunpack.c.h.b16 %v815
    %v858 = vunpack.c.l.b16 %v816
    %v859 = vunpack.c.h.b16 %v816
    %v860 = vunpack.c.l.b16 %v817
    %v861 = vunpack.c.h.b16 %v817
    %v862 = vunpack.c.l.b16 %v818
    %v863 = vunpack.c.h.b16 %v818
    %v864 = vunpack.c.l.b16 %v819
    %v865 = vunpack.c.h.b16 %v819
    %v866 = vunpack.c.l.b16 %v820
    %v867 = vunpack.c.h.b16 %v820
    %v868 = vunpack.c.l.b16 %v821
    %v869 = vunpack.c.h.b16 %v821
    %v870 = vunpack.c.l.b16 %v822
    %v871 = vunpack.c.h.b16 %v822
    %v872 = vunpack.c.l.b16 %v823
    %v873 = vunpack.c.h.b16 %v823
    %v874 = vunpack.c.l.b16 %v824
    %v875 = vunpack.c.h.b16 %v824
    %v876 = vunpack.c.l.b16 %v825
    %v877 = vunpack.c.h.b16 %v825
    %v878 = vunpack.c.l.b16 %v826
    %v879 = vunpack.c.h.b16 %v826
    %v880 = vunpack.c.l.b16 %v827
    %v881 = vunpack.c.h.b16 %v827
    %v882 = vunpack.c.l.b16 %v828
    %v883 = vunpack.c.h.b16 %v828
    %v884 = vunpack.c.l.b16 %v829
    %v885 = vunpack.c.h.b16 %v829
    %v886 = vpack.c.b16 %v856, %v854
    %v887 = vpack.c.b16 %v857, %v855
    %v888 = vpack.c.b16 %v860, %v858
    %v889 = vpack.c.b16 %v861, %v859
    %v890 = vpack.c.b16 %v864, %v862
    %v891 = vpack.c.b16 %v865, %v863
    %v892 = vpack.c.b16 %v868, %v866
    %v893 = vpack.c.b16 %v869, %v867
    %v894 = vpack.c.b16 %v872, %v870
    %v895 = vpack.c.b16 %v873, %v871
    %v896 = vpack.c.b16 %v876, %v874
    %v897 = vpack.c.b16 %v877, %v875
    %v898 = vpack.c.b16 %v880, %v878
    %v899 = vpack.c.b16 %v881, %v879
    %v900 = vpack.c.b16 %v884, %v882
    %v901 = vpack.c.b16 %v885, %v883
    %918 = vmatpush.bf16.msra.mxu0 %v900
    %919 = vmatpush.bf16.msra.mxu0 %v898
    %920 = vmatpush.bf16.msra.mxu0 %v896
    %921 = vmatpush.bf16.msra.mxu0 %v894
    %922 = vmatpush.bf16.msra.mxu0 %v892
    %923 = vmatpush.bf16.msra.mxu0 %v890
    %924 = vmatpush.bf16.msra.mxu0 %v888
    %925 = vmatpush.bf16.msra.mxu0 %v886
    %926 = vmatmul.bf16.gmra.mxu0 %v830
    %v927 = vpop.f32.mrf.mxu0
    %v928 = vadd.f32 %v834, %v927
    %v929 = vpop.f32.mrf.mxu0
    %930 = vdwg.mxu0
    %931 = vmatpush.bf16.msra.mxu0 %v901
    %932 = vmatpush.bf16.msra.mxu0 %v899
    %933 = vmatpush.bf16.msra.mxu0 %v897
    %934 = vmatpush.bf16.msra.mxu0 %v895
    %935 = vmatpush.bf16.msra.mxu0 %v893
    %936 = vmatpush.bf16.msra.mxu0 %v891
    %937 = vmatpush.bf16.msra.mxu0 %v889
    %938 = vmatpush.bf16.msra.mxu0 %v887
    %939 = vmatmul.bf16.gmra.mxu0 %v830
    %v940 = vpop.f32.mrf.mxu0
    %v941 = vadd.f32 %v835, %v940
    %v942 = vpop.f32.mrf.mxu0
    %943 = vdwg.mxu0
    %v944 = vmul.f32 %v928, 0.01
    %v945 = vmul.f32 %v941, 0.01
    %v946 = vmax.f32 %v928, %v944
    %v947 = vmax.f32 %v941, %v945
    %s948 = scalar_lea.vmem [#allocation8], 128
    %v949 = vld [vmem:[%s948] sm:$0xf]
    %v950 = vld [vmem:[%s948 + $0x4] sm:$0xf]
    %v951 = vld [vmem:[%s948 + $0x8] sm:$0xf]
    %v952 = vld [vmem:[%s948 + $0xc] sm:$0xf]
    %v953 = vld [vmem:[%s948 + $0x10] sm:$0xf]
    %v954 = vld [vmem:[%s948 + $0x14] sm:$0xf]
    %v955 = vld [vmem:[%s948 + $0x18] sm:$0xf]
    %v956 = vld [vmem:[%s948 + $0x1c] sm:$0xf]
    %v957 = vld [vmem:[%s948 + $0x20] sm:$0xf]
    %v958 = vld [vmem:[%s948 + $0x24] sm:$0xf]
    %v959 = vld [vmem:[%s948 + $0x28] sm:$0xf]
    %v960 = vld [vmem:[%s948 + $0x2c] sm:$0xf]
    %v961 = vld [vmem:[%s948 + $0x30] sm:$0xf]
    %v962 = vld [vmem:[%s948 + $0x34] sm:$0xf]
    %v963 = vld [vmem:[%s948 + $0x38] sm:$0xf]
    %v964 = vld [vmem:[%s948 + $0x3c] sm:$0xf]
    %v965 = vld [vmem:[%s948 + $0x40] sm:$0xf]
    %v966 = vld [vmem:[%s948 + $0x44] sm:$0xf]
    %v967 = vld [vmem:[%s948 + $0x48] sm:$0xf]
    %v968 = vld [vmem:[%s948 + $0x4c] sm:$0xf]
    %v969 = vld [vmem:[%s948 + $0x50] sm:$0xf]
    %v970 = vld [vmem:[%s948 + $0x54] sm:$0xf]
    %v971 = vld [vmem:[%s948 + $0x58] sm:$0xf]
    %v972 = vld [vmem:[%s948 + $0x5c] sm:$0xf]
    %v973 = vld [vmem:[%s948 + $0x60] sm:$0xf]
    %v974 = vld [vmem:[%s948 + $0x64] sm:$0xf]
    %v975 = vld [vmem:[%s948 + $0x68] sm:$0xf]
    %v976 = vld [vmem:[%s948 + $0x6c] sm:$0xf]
    %v977 = vld [vmem:[%s948 + $0x70] sm:$0xf]
    %v978 = vld [vmem:[%s948 + $0x74] sm:$0xf]
    %v979 = vld [vmem:[%s948 + $0x78] sm:$0xf]
    %v980 = vld [vmem:[%s948 + $0x7c] sm:$0xf]
    %v981 = vpack.c.bf16 %v946, %v946
    %v982 = vpack.c.bf16 %v947, %v947
    %v983 = vld [vmem:[#allocation10 + $0x17] ss:$0 sm:$0xff]
    %v1016 = vunpack.c.l.b16 %v949
    %v1017 = vunpack.c.l.b16 %v950
    %v1018 = vunpack.c.l.b16 %v951
    %v1019 = vunpack.c.l.b16 %v952
    %v1020 = vunpack.c.l.b16 %v953
    %v1021 = vunpack.c.l.b16 %v954
    %v1022 = vunpack.c.l.b16 %v955
    %v1023 = vunpack.c.l.b16 %v956
    %v1024 = vunpack.c.l.b16 %v957
    %v1025 = vunpack.c.l.b16 %v958
    %v1026 = vunpack.c.l.b16 %v959
    %v1027 = vunpack.c.l.b16 %v960
    %v1028 = vunpack.c.l.b16 %v961
    %v1029 = vunpack.c.l.b16 %v962
    %v1030 = vunpack.c.l.b16 %v963
    %v1031 = vunpack.c.l.b16 %v964
    %v1032 = vunpack.c.l.b16 %v965
    %v1033 = vunpack.c.l.b16 %v966
    %v1034 = vunpack.c.l.b16 %v967
    %v1035 = vunpack.c.l.b16 %v968
    %v1036 = vunpack.c.l.b16 %v969
    %v1037 = vunpack.c.l.b16 %v970
    %v1038 = vunpack.c.l.b16 %v971
    %v1039 = vunpack.c.l.b16 %v972
    %v1040 = vunpack.c.l.b16 %v973
    %v1041 = vunpack.c.l.b16 %v974
    %v1042 = vunpack.c.l.b16 %v975
    %v1043 = vunpack.c.l.b16 %v976
    %v1044 = vunpack.c.l.b16 %v977
    %v1045 = vunpack.c.l.b16 %v978
    %v1046 = vunpack.c.l.b16 %v979
    %v1047 = vunpack.c.l.b16 %v980
    %v1048 = vpack.c.b16 %v1017, %v1016
    %v1049 = vpack.c.b16 %v1019, %v1018
    %v1050 = vpack.c.b16 %v1021, %v1020
    %v1051 = vpack.c.b16 %v1023, %v1022
    %v1052 = vpack.c.b16 %v1025, %v1024
    %v1053 = vpack.c.b16 %v1027, %v1026
    %v1054 = vpack.c.b16 %v1029, %v1028
    %v1055 = vpack.c.b16 %v1031, %v1030
    %v1056 = vpack.c.b16 %v1033, %v1032
    %v1057 = vpack.c.b16 %v1035, %v1034
    %v1058 = vpack.c.b16 %v1037, %v1036
    %v1059 = vpack.c.b16 %v1039, %v1038
    %v1060 = vpack.c.b16 %v1041, %v1040
    %v1061 = vpack.c.b16 %v1043, %v1042
    %v1062 = vpack.c.b16 %v1045, %v1044
    %v1063 = vpack.c.b16 %v1047, %v1046
    %1080 = vmatpush.bf16.msra.mxu0 %v1055
    %1081 = vmatpush.bf16.msra.mxu0 %v1054
    %1082 = vmatpush.bf16.msra.mxu0 %v1053
    %1083 = vmatpush.bf16.msra.mxu0 %v1052
    %1084 = vmatpush.bf16.msra.mxu0 %v1051
    %1085 = vmatpush.bf16.msra.mxu0 %v1050
    %1086 = vmatpush.bf16.msra.mxu0 %v1049
    %1087 = vmatpush.bf16.msra.mxu0 %v1048
    %1088 = vmatmul.bf16.gmra.mxu0 %v981
    %v1089 = vpop.f32.mrf.mxu0
    %v1090 = vadd.f32 %v983, %v1089
    %v1091 = vpop.f32.mrf.mxu0
    %1092 = vdwg.mxu0
    %1093 = vmatpush.bf16.msra.mxu0 %v1063
    %1094 = vmatpush.bf16.msra.mxu0 %v1062
    %1095 = vmatpush.bf16.msra.mxu0 %v1061
    %1096 = vmatpush.bf16.msra.mxu0 %v1060
    %1097 = vmatpush.bf16.msra.mxu0 %v1059
    %1098 = vmatpush.bf16.msra.mxu0 %v1058
    %1099 = vmatpush.bf16.msra.mxu0 %v1057
    %1100 = vmatpush.bf16.msra.mxu0 %v1056
    %1101 = vmatmul.bf16.gmra.mxu0 %v982
    %v1102 = vpop.f32.mrf.mxu0
    %v1103 = vadd.f32 %v1090, %v1102
    %v1104 = vpop.f32.mrf.mxu0
    %1105 = vdwg.mxu0
    %v1106 = vmax.f32 %v1103, 0.0
    %1107 = vst.msk [vmem:[#allocation11] sm:$0xff] %vm118, %v1106
    // Predicated region
    $region42: #{george_sae_bn_forward.1} parent=1 // pred_check
      _
    $region43: #{george_sae_bn_forward.1} parent=1 // pred_check_branch
      %1109 = sbr.rel (0) target = $region45
    $region44: #{george_sae_bn_forward.1} parent=1 // pred_region
      %1111 = vsyncadd [#allocation4], 0
      %s1113 = sshll.u32 [#allocation11], 4
      %s1114 = int_to_ptr.vmem [resolvable:$true] %s1113
      %s1115 = sshll.u32 %s5, 4
      %s1116 = int_to_ptr.hbm [resolvable:$true] %s1115
      %1118 = dma.vmem_to_hbm [thread:$0]  %s1114, 128, %s1116, [#allocation4]
    $region45: #{george_sae_bn_forward.1} parent=1 // pred_fallthru
      _
    // Predicated region
    $region46: #{george_sae_bn_forward.1} parent=1 // pred_check
      _
    $region47: #{george_sae_bn_forward.1} parent=1 // pred_check_branch
      %1120 = sbr.rel (0) target = $region49
    $region48: #{george_sae_bn_forward.1} parent=1 // pred_region
      %1122 = dma.done [#allocation4], 128
    $region49: #{george_sae_bn_forward.1} parent=1 // pred_fallthru
      _
    %1123 = vsyncpa [#allocation3], 1
    %1124 = vsyncpa [#allocation6], 1
    %1125 = vsyncpa [#allocation9], 1
    %1126 = vsyncpa [#allocation4], 1

</llo_original>
